<compile_context>
chip_gen: v6e
topology: v6e:2x2x1
jax: 0.10.0
libtpu: 0.0.40
codegen_flags: <defaults>
</compile_context>

<pallas_src>
import jax
import jax.numpy as jnp
from jax.experimental import pallas as pl
from jax.experimental.pallas import tpu as pltpu

PADW = 128            # lane padding for resident weights / hidden activations
SUBLANE = 8           # sublane alignment for the batch tile
L2_EPS = 1e-12        # matches torch.nn.functional.normalize default eps
MAX_TILE_BATCH = 2048 # rows per grid step for large batches (safe on v5e/v6e/v7x)


def _round_up(n, m):
    return ((n + m - 1) // m) * m


def _make_kernel(n_in):
    """Build the fused forward kernel; n_in = true number of input features."""

    def kernel(x_ref, wt0_ref, b0_ref, wt1_ref, b1_ref, wt2_ref, b2_ref,
               wto_ref, bo_ref, out_ref):
        x = x_ref[...]                                       # (TB, n_in) f32
        # hidden0: Linear(n_in -> 32) + ReLU as VPU broadcast-MACs (K is tiny).
        h0 = x[:, 0:1] * wt0_ref[0:1, :]
        for f in range(1, n_in):
            h0 = h0 + x[:, f:f + 1] * wt0_ref[f:f + 1, :]
        h0 = jnp.maximum(h0 + b0_ref[...], 0.0)              # (TB, 128), pad lanes = 0
        # hidden1: Linear + ReLU (MXU)
        h1 = jnp.dot(h0, wt1_ref[...], preferred_element_type=jnp.float32)
        h1 = jnp.maximum(h1 + b1_ref[...], 0.0)
        # hidden2: Linear + L2 normalization over the feature axis (torch dim=1)
        h2 = jnp.dot(h1, wt2_ref[...], preferred_element_type=jnp.float32)
        h2 = h2 + b2_ref[...]
        norm = jnp.sqrt(jnp.sum(h2 * h2, axis=1, keepdims=True))
        inv = pl.reciprocal(jnp.maximum(norm, L2_EPS), approx=False)
        h2n = h2 * inv                                       # == h2 / norm.clamp_min(eps)
        # output head: Linear; store only the real class columns.
        out = jnp.dot(h2n, wto_ref[...], preferred_element_type=jnp.float32)
        out = out + bo_ref[...]
        n_out = out_ref.shape[-1]
        out_ref[...] = out[:, :n_out]

    return kernel


def init_params(key, hidden_layer_sizes, n_input_features, n_output_classes):
    """Deterministic init mimicking torch.nn.Linear default (U[-1/sqrt(fan_in), +1/sqrt(fan_in)]).
       Weight layout follows torch: (out_features, in_features)."""
    sizes = [n_input_features] + list(hidden_layer_sizes) + [n_output_classes]
    params = []
    for i in range(len(sizes) - 1):
        fan_in, fan_out = sizes[i], sizes[i + 1]
        key, kw, kb = jax.random.split(key, 3)
        bound = 1.0 / (fan_in ** 0.5)
        w = jax.random.uniform(kw, (fan_out, fan_in), jnp.float32, -bound, bound)
        b = jax.random.uniform(kb, (fan_out,), jnp.float32, -bound, bound)
        params.append((w, b))
    return params


def _pad_wt(w, rows):
    """torch weight (out, in) -> transposed + zero-padded (rows, PADW) so kernel does x @ Wt."""
    wt = w.T.astype(jnp.float32)
    buf = jnp.zeros((rows, PADW), jnp.float32)
    return buf.at[:wt.shape[0], :wt.shape[1]].set(wt)


def _pad_b(b):
    buf = jnp.zeros((1, PADW), jnp.float32)
    return buf.at[0, :b.shape[0]].set(b.astype(jnp.float32))


def mlp_forward(x, params, *, max_tile_batch=MAX_TILE_BATCH):
    N, F = x.shape
    C = params[-1][0].shape[0]
    x = x.astype(jnp.float32)

    # Small batches -> a single block (no per-step grid overhead); large batches ->
    # TB-row tiles so per-step VMEM stays a few MiB on every TPU generation.
    if N <= max_tile_batch:
        TB = _round_up(max(N, 1), SUBLANE)
    else:
        TB = max_tile_batch
    Np = _round_up(N, TB)
    xp = x if Np == N else jnp.zeros((Np, F), jnp.float32).at[:N, :].set(x)

    (w0, b0), (w1, b1), (w2, b2), (wo, bo) = params
    flat = [
        _pad_wt(w0, rows=_round_up(F, SUBLANE)), _pad_b(b0),
        _pad_wt(w1, rows=PADW), _pad_b(b1),
        _pad_wt(w2, rows=PADW), _pad_b(b2),
        _pad_wt(wo, rows=PADW), _pad_b(bo),
    ]

    in_specs = [pl.BlockSpec((TB, F), lambda i: (i, 0))]            # x: tiled over batch
    in_specs += [pl.BlockSpec(a.shape, lambda i: (0, 0)) for a in flat]  # resident weights
    out_spec = pl.BlockSpec((TB, C), lambda i: (i, 0))

    out_padded = pl.pallas_call(
        _make_kernel(F),
        out_shape=jax.ShapeDtypeStruct((Np, C), jnp.float32),
        grid=(Np // TB,),
        in_specs=in_specs,
        out_specs=out_spec,
        compiler_params=pltpu.CompilerParams(
            dimension_semantics=("parallel",)),
    )(xp, *flat)

    return out_padded if Np == N else out_padded[:N]


def mlp_forward_ref(x, params):
    """Pure-JAX reference of the PyTorch forward (for correctness check)."""
    h = x.astype(jnp.float32)
    acts = ['relu', 'relu', 'l2normalization']
    for (w, b), act in zip(params[:-1], acts):
        h = h @ w.T + b
        if act == 'relu':
            h = jnp.maximum(h, 0.0)
        else:
            norm = jnp.sqrt(jnp.sum(h * h, axis=1, keepdims=True))
            h = h / jnp.maximum(norm, L2_EPS)
    w, b = params[-1]
    return h @ w.T + b


# TODO(synk): setup_trainable_parameters / requires_grad bookkeeping is training-only
# metadata with no effect on the forward pass, so it is not represented in the kernel.

if __name__ == "__main__":
    key = jax.random.PRNGKey(0)
    kx, kx2 = jax.random.split(key)

    params = init_params(jax.random.PRNGKey(42),
                         hidden_layer_sizes=[32, 2, 2],
                         n_input_features=2,
                         n_output_classes=2)

    # small demo batch (batch=8, n_input_features=2): single block, no padding
    x = jax.random.normal(kx, (8, 2), jnp.float32)
    out = jax.block_until_ready(mlp_forward(x, params))
    ref = mlp_forward_ref(x, params)
    assert out.shape == (8, 2), out.shape
    assert jnp.allclose(out, ref, atol=1e-5, rtol=1e-5), "mismatch vs reference (N=8)"

    # ragged batch (batch=20): exercises the batch-remainder padding path
    x2 = jax.random.normal(kx2, (20, 2), jnp.float32)
    out2 = jax.block_until_ready(mlp_forward(x2, params))
    ref2 = mlp_forward_ref(x2, params)
    assert out2.shape == (20, 2), out2.shape
    assert jnp.allclose(out2, ref2, atol=1e-5, rtol=1e-5), "mismatch vs reference (N=20)"

    print("KERNEL_OK")
</pallas_src>

<mosaic_0001>
module attributes {stable_mosaic.version = 11 : i64} {
  func.func @kernel(%arg0: i32, %arg1: memref<8x2xf32, #tpu.memory_space<vmem>>, %arg2: memref<8x128xf32, #tpu.memory_space<vmem>>, %arg3: memref<1x128xf32, #tpu.memory_space<vmem>>, %arg4: memref<128x128xf32, #tpu.memory_space<vmem>>, %arg5: memref<1x128xf32, #tpu.memory_space<vmem>>, %arg6: memref<128x128xf32, #tpu.memory_space<vmem>>, %arg7: memref<1x128xf32, #tpu.memory_space<vmem>>, %arg8: memref<128x128xf32, #tpu.memory_space<vmem>>, %arg9: memref<1x128xf32, #tpu.memory_space<vmem>>, %arg10: memref<8x2xf32, #tpu.memory_space<vmem>>) attributes {dimension_semantics = [#tpu.dimension_semantics<parallel>], iteration_bounds = array<i64: 1>, scalar_prefetch = 0 : i64, scratch_operands = 0 : i64, tpu.core_type = #tpu.core_type<tc>, window_params = [{transform_indices = @transform_0, window_bounds = array<i64: 8, 2>}, {pipeline_mode = #tpu.pipeline_mode<synchronous>, transform_indices = @transform_1, window_bounds = array<i64: 8, 128>}, {pipeline_mode = #tpu.pipeline_mode<synchronous>, transform_indices = @transform_2, window_bounds = array<i64: 1, 128>}, {pipeline_mode = #tpu.pipeline_mode<synchronous>, transform_indices = @transform_3, window_bounds = array<i64: 128, 128>}, {pipeline_mode = #tpu.pipeline_mode<synchronous>, transform_indices = @transform_4, window_bounds = array<i64: 1, 128>}, {pipeline_mode = #tpu.pipeline_mode<synchronous>, transform_indices = @transform_5, window_bounds = array<i64: 128, 128>}, {pipeline_mode = #tpu.pipeline_mode<synchronous>, transform_indices = @transform_6, window_bounds = array<i64: 1, 128>}, {pipeline_mode = #tpu.pipeline_mode<synchronous>, transform_indices = @transform_7, window_bounds = array<i64: 128, 128>}, {pipeline_mode = #tpu.pipeline_mode<synchronous>, transform_indices = @transform_8, window_bounds = array<i64: 1, 128>}, {transform_indices = @transform_9, window_bounds = array<i64: 8, 2>}]} {
    %c0 = arith.constant 0 : index
    %c0_0 = arith.constant 0 : index
    %0 = vector.load %arg1[%c0, %c0_0] : memref<8x2xf32, #tpu.memory_space<vmem>>, vector<8x2xf32>
    %1 = vector.extract_strided_slice %0 {offsets = [0, 0], sizes = [8, 1], strides = [1, 1]} : vector<8x2xf32> to vector<8x1xf32>
    %c0_1 = arith.constant 0 : index
    %c0_2 = arith.constant 0 : index
    %2 = vector.load %arg2[%c0_1, %c0_2] : memref<8x128xf32, #tpu.memory_space<vmem>>, vector<1x128xf32>
    %3 = vector.broadcast %1 : vector<8x1xf32> to vector<8x128xf32>
    %4 = vector.broadcast %2 : vector<1x128xf32> to vector<8x128xf32>
    %5 = arith.mulf %3, %4 : vector<8x128xf32>
    %6 = vector.extract_strided_slice %0 {offsets = [0, 1], sizes = [8, 1], strides = [1, 1]} : vector<8x2xf32> to vector<8x1xf32>
    %c1 = arith.constant 1 : index
    %c0_3 = arith.constant 0 : index
    %7 = vector.load %arg2[%c1, %c0_3] : memref<8x128xf32, #tpu.memory_space<vmem>>, vector<1x128xf32>
    %8 = vector.broadcast %6 : vector<8x1xf32> to vector<8x128xf32>
    %9 = vector.broadcast %7 : vector<1x128xf32> to vector<8x128xf32>
    %10 = arith.mulf %8, %9 : vector<8x128xf32>
    %11 = arith.addf %5, %10 : vector<8x128xf32>
    %c0_4 = arith.constant 0 : index
    %c0_5 = arith.constant 0 : index
    %12 = vector.load %arg3[%c0_4, %c0_5] : memref<1x128xf32, #tpu.memory_space<vmem>>, vector<1x128xf32>
    %13 = vector.broadcast %12 : vector<1x128xf32> to vector<8x128xf32>
    %14 = arith.addf %11, %13 : vector<8x128xf32>
    %cst = arith.constant 0.000000e+00 : f32
    %15 = vector.broadcast %cst : f32 to vector<8x128xf32>
    %16 = arith.maximumf %14, %15 : vector<8x128xf32>
    %c0_6 = arith.constant 0 : index
    %c0_7 = arith.constant 0 : index
    %17 = vector.load %arg4[%c0_6, %c0_7] : memref<128x128xf32, #tpu.memory_space<vmem>>, vector<128x128xf32>
    %cst_8 = arith.constant dense<0.000000e+00> : vector<8x128xf32>
    %18 = tpu.matmul %16, %17, %cst_8 {dimension_numbers = #tpu.dot_dimension_numbers<[1], [0], [0], [1], [0, 0, 1, 1], [], []>} : vector<8x128xf32>, vector<128x128xf32>, vector<8x128xf32> -> vector<8x128xf32>
    %c0_9 = arith.constant 0 : index
    %c0_10 = arith.constant 0 : index
    %19 = vector.load %arg5[%c0_9, %c0_10] : memref<1x128xf32, #tpu.memory_space<vmem>>, vector<1x128xf32>
    %20 = vector.broadcast %19 : vector<1x128xf32> to vector<8x128xf32>
    %21 = arith.addf %18, %20 : vector<8x128xf32>
    %cst_11 = arith.constant 0.000000e+00 : f32
    %22 = vector.broadcast %cst_11 : f32 to vector<8x128xf32>
    %23 = arith.maximumf %21, %22 : vector<8x128xf32>
    %c0_12 = arith.constant 0 : index
    %c0_13 = arith.constant 0 : index
    %24 = vector.load %arg6[%c0_12, %c0_13] : memref<128x128xf32, #tpu.memory_space<vmem>>, vector<128x128xf32>
    %cst_14 = arith.constant dense<0.000000e+00> : vector<8x128xf32>
    %25 = tpu.matmul %23, %24, %cst_14 {dimension_numbers = #tpu.dot_dimension_numbers<[1], [0], [0], [1], [0, 0, 1, 1], [], []>} : vector<8x128xf32>, vector<128x128xf32>, vector<8x128xf32> -> vector<8x128xf32>
    %c0_15 = arith.constant 0 : index
    %c0_16 = arith.constant 0 : index
    %26 = vector.load %arg7[%c0_15, %c0_16] : memref<1x128xf32, #tpu.memory_space<vmem>>, vector<1x128xf32>
    %27 = vector.broadcast %26 : vector<1x128xf32> to vector<8x128xf32>
    %28 = arith.addf %25, %27 : vector<8x128xf32>
    %29 = arith.mulf %28, %28 : vector<8x128xf32>
    %cst_17 = arith.constant dense<0.000000e+00> : vector<8xf32>
    %30 = vector.multi_reduction <add>, %29, %cst_17 [1] : vector<8x128xf32> to vector<8xf32>
    %31 = vector.shape_cast %30 : vector<8xf32> to vector<8x1xf32>
    %32 = math.sqrt %31 : vector<8x1xf32>
    %cst_18 = arith.constant 9.99999996E-13 : f32
    %33 = vector.broadcast %cst_18 : f32 to vector<8x1xf32>
    %34 = arith.maximumf %32, %33 : vector<8x1xf32>
    %35 = tpu.reciprocal %34 : vector<8x1xf32> -> vector<8x1xf32>
    %36 = vector.broadcast %35 : vector<8x1xf32> to vector<8x128xf32>
    %37 = arith.mulf %28, %36 : vector<8x128xf32>
    %c0_19 = arith.constant 0 : index
    %c0_20 = arith.constant 0 : index
    %38 = vector.load %arg8[%c0_19, %c0_20] : memref<128x128xf32, #tpu.memory_space<vmem>>, vector<128x128xf32>
    %cst_21 = arith.constant dense<0.000000e+00> : vector<8x128xf32>
    %39 = tpu.matmul %37, %38, %cst_21 {dimension_numbers = #tpu.dot_dimension_numbers<[1], [0], [0], [1], [0, 0, 1, 1], [], []>} : vector<8x128xf32>, vector<128x128xf32>, vector<8x128xf32> -> vector<8x128xf32>
    %c0_22 = arith.constant 0 : index
    %c0_23 = arith.constant 0 : index
    %40 = vector.load %arg9[%c0_22, %c0_23] : memref<1x128xf32, #tpu.memory_space<vmem>>, vector<1x128xf32>
    %41 = vector.broadcast %40 : vector<1x128xf32> to vector<8x128xf32>
    %42 = arith.addf %39, %41 : vector<8x128xf32>
    %43 = vector.extract_strided_slice %42 {offsets = [0, 0], sizes = [8, 2], strides = [1, 1]} : vector<8x128xf32> to vector<8x2xf32>
    %c0_24 = arith.constant 0 : index
    %c0_25 = arith.constant 0 : index
    %44 = vector.load %arg10[%c0_24, %c0_25] : memref<8x2xf32, #tpu.memory_space<vmem>>, vector<8x2xf32>
    tpu.vector_store %arg10[%c0_24, %c0_25], %43 {strides = array<i32>} : memref<8x2xf32, #tpu.memory_space<vmem>>, vector<8x2xf32>,
    return
  }
  func.func @transform_0(%arg0: i32) -> (i32, i32) {
    %c0_i32 = arith.constant 0 : i32
    %c0_i32_0 = arith.constant 0 : i32
    return %arg0, %c0_i32 : i32, i32
  }
  func.func @transform_1(%arg0: i32) -> (i32, i32) {
    %c0_i32 = arith.constant 0 : i32
    %c0_i32_0 = arith.constant 0 : i32
    %c0_i32_1 = arith.constant 0 : i32
    return %c0_i32, %c0_i32_0 : i32, i32
  }
  func.func @transform_2(%arg0: i32) -> (i32, i32) {
    %c0_i32 = arith.constant 0 : i32
    %c0_i32_0 = arith.constant 0 : i32
    %c0_i32_1 = arith.constant 0 : i32
    return %c0_i32, %c0_i32_0 : i32, i32
  }
  func.func @transform_3(%arg0: i32) -> (i32, i32) {
    %c0_i32 = arith.constant 0 : i32
    %c0_i32_0 = arith.constant 0 : i32
    %c0_i32_1 = arith.constant 0 : i32
    return %c0_i32, %c0_i32_0 : i32, i32
  }
  func.func @transform_4(%arg0: i32) -> (i32, i32) {
    %c0_i32 = arith.constant 0 : i32
    %c0_i32_0 = arith.constant 0 : i32
    %c0_i32_1 = arith.constant 0 : i32
    return %c0_i32, %c0_i32_0 : i32, i32
  }
  func.func @transform_5(%arg0: i32) -> (i32, i32) {
    %c0_i32 = arith.constant 0 : i32
    %c0_i32_0 = arith.constant 0 : i32
    %c0_i32_1 = arith.constant 0 : i32
    return %c0_i32, %c0_i32_0 : i32, i32
  }
  func.func @transform_6(%arg0: i32) -> (i32, i32) {
    %c0_i32 = arith.constant 0 : i32
    %c0_i32_0 = arith.constant 0 : i32
    %c0_i32_1 = arith.constant 0 : i32
    return %c0_i32, %c0_i32_0 : i32, i32
  }
  func.func @transform_7(%arg0: i32) -> (i32, i32) {
    %c0_i32 = arith.constant 0 : i32
    %c0_i32_0 = arith.constant 0 : i32
    %c0_i32_1 = arith.constant 0 : i32
    return %c0_i32, %c0_i32_0 : i32, i32
  }
  func.func @transform_8(%arg0: i32) -> (i32, i32) {
    %c0_i32 = arith.constant 0 : i32
    %c0_i32_0 = arith.constant 0 : i32
    %c0_i32_1 = arith.constant 0 : i32
    return %c0_i32, %c0_i32_0 : i32, i32
  }
  func.func @transform_9(%arg0: i32) -> (i32, i32) {
    %c0_i32 = arith.constant 0 : i32
    %c0_i32_0 = arith.constant 0 : i32
    return %arg0, %c0_i32 : i32, i32
  }
}

</mosaic_0001>

<llo_original>
// kernel: tpu_custom_call.1
$region0: #{tpu_custom_call.1}
  #allocation0 [shape = 'u32[]', space=smem, size = 0x4, offset = 0x4, fixed_abs, tag = 'smem constant byte address 0x4 - core index']
  #allocation1 [shape = 'u32[144,128]{1,0:T(1,128)}', space=vmem, size = 0x12000, scoped, tag = 'internal scratch']
  %s0 = inlined_call_operand.vmem [shape: f32[8,2], index: 0, kind: input, shape index: {}]
  %s1 = inlined_call_operand.vmem [shape: f32[8,128], index: 1, kind: input, shape index: {}]
  %s2 = inlined_call_operand.vmem [shape: f32[1,128], index: 2, kind: input, shape index: {}]
  %s3 = inlined_call_operand.hbm [shape: f32[128,128], index: 3, kind: input, shape index: {}]
  %s4 = inlined_call_operand.vmem [shape: f32[1,128], index: 4, kind: input, shape index: {}]
  %s5 = inlined_call_operand.hbm [shape: f32[128,128], index: 5, kind: input, shape index: {}]
  %s6 = inlined_call_operand.vmem [shape: f32[1,128], index: 6, kind: input, shape index: {}]
  %s7 = inlined_call_operand.hbm [shape: f32[128,128], index: 7, kind: input, shape index: {}]
  %s8 = inlined_call_operand.vmem [shape: f32[1,128], index: 8, kind: input, shape index: {}]
  %s9 = inlined_call_operand.vmem [shape: f32[8,2], index: 9, kind: output, shape index: {}]
  %s10 = sld [smem:[#allocation0]]
  $region58: #{tpu_custom_call.1} parent=0
    _
  %s12 = ssub.s32 1, %s10
  %s13 = scalar_select 0, %s12, %s10
  $region1: #{tpu_custom_call.1} parent=0
    #allocation2 [shape = 'u8[65536]{0}', space=vmem, size = 0x10000, scoped, tag = 'input window, operand 3, single buffered']
    #allocation3 [shape = 's32[1]{0}', space=sflag, size = 0x4, scoped, tag = 'scoped memory for tpu_custom_call.1']
    #allocation4 [shape = 'u8[65536]{0}', space=vmem, size = 0x10000, scoped, tag = 'input window, operand 5, single buffered']
    #allocation5 [shape = 's32[1]{0}', space=sflag, size = 0x4, scoped, tag = 'scoped memory for tpu_custom_call.1']
    #allocation6 [shape = 'u8[65536]{0}', space=vmem, size = 0x10000, scoped, tag = 'input window, operand 7, single buffered']
    %14 = vsyncpa [#allocation3], 0
    %15 = vsyncpa [#allocation5], 0
    // Predicated region
    $region2: #{tpu_custom_call.1} parent=1 // pred_check
      _
    $region3: #{tpu_custom_call.1} parent=1 // pred_check_branch
      %17 = sbr.rel (0) target = $region5
    $region4: #{tpu_custom_call.1} parent=1 // pred_region
      _
    $region5: #{tpu_custom_call.1} parent=1 // pred_fallthru
      _
    // Predicated region
    $region6: #{tpu_custom_call.1} parent=1 // pred_check
      _
    $region7: #{tpu_custom_call.1} parent=1 // pred_check_branch
      %19 = sbr.rel (0) target = $region9
    $region8: #{tpu_custom_call.1} parent=1 // pred_region
      _
    $region9: #{tpu_custom_call.1} parent=1 // pred_fallthru
      _
    // Predicated region
    $region10: #{tpu_custom_call.1} parent=1 // pred_check
      _
    $region11: #{tpu_custom_call.1} parent=1 // pred_check_branch
      %21 = sbr.rel (0) target = $region13
    $region12: #{tpu_custom_call.1} parent=1 // pred_region
      _
    $region13: #{tpu_custom_call.1} parent=1 // pred_fallthru
      _
    // Predicated region
    $region14: #{tpu_custom_call.1} parent=1 // pred_check
      _
    $region15: #{tpu_custom_call.1} parent=1 // pred_check_branch
      %23 = sbr.rel (0) target = $region17
    $region16: #{tpu_custom_call.1} parent=1 // pred_region
      %s25 = ssub.s32 2048, 2048
      %26 = vsyncadd [#allocation3], %s25
      %s27 = sshll.u32 [#allocation2], 4
      %s28 = int_to_ptr.vmem [resolvable:$true] %s27
      %33 = dma.hbm_to_vmem [thread:$0]  %s3, 2048, %s28, [#allocation3], 128, 128, 8
    $region17: #{tpu_custom_call.1} parent=1 // pred_fallthru
      _
    // Predicated region
    $region18: #{tpu_custom_call.1} parent=1 // pred_check
      _
    $region19: #{tpu_custom_call.1} parent=1 // pred_check_branch
      %35 = sbr.rel (0) target = $region21
    $region20: #{tpu_custom_call.1} parent=1 // pred_region
      _
    $region21: #{tpu_custom_call.1} parent=1 // pred_fallthru
      _
    // Predicated region
    $region22: #{tpu_custom_call.1} parent=1 // pred_check
      _
    $region23: #{tpu_custom_call.1} parent=1 // pred_check_branch
      %37 = sbr.rel (0) target = $region25
    $region24: #{tpu_custom_call.1} parent=1 // pred_region
      %s39 = ssub.s32 2048, 2048
      %40 = vsyncadd [#allocation5], %s39
      %s41 = sshll.u32 [#allocation4], 4
      %s42 = int_to_ptr.vmem [resolvable:$true] %s41
      %47 = dma.hbm_to_vmem [thread:$0]  %s5, 2048, %s42, [#allocation5], 128, 128, 8
    $region25: #{tpu_custom_call.1} parent=1 // pred_fallthru
      _
    // Predicated region
    $region26: #{tpu_custom_call.1} parent=1 // pred_check
      _
    $region27: #{tpu_custom_call.1} parent=1 // pred_check_branch
      %49 = sbr.rel (0) target = $region29
    $region28: #{tpu_custom_call.1} parent=1 // pred_region
      _
    $region29: #{tpu_custom_call.1} parent=1 // pred_fallthru
      _
    // Predicated region
    $region30: #{tpu_custom_call.1} parent=1 // pred_check
      _
    $region31: #{tpu_custom_call.1} parent=1 // pred_check_branch
      %51 = sbr.rel (0) target = $region33
    $region32: #{tpu_custom_call.1} parent=1 // pred_region
      %s53 = ssub.s32 2048, 2048
      %54 = vsyncadd [#allocation5], %s53
      %s55 = sshll.u32 [#allocation6], 4
      %s56 = int_to_ptr.vmem [resolvable:$true] %s55
      %61 = dma.hbm_to_vmem [thread:$0]  %s7, 2048, %s56, [#allocation5], 128, 128, 8
    $region33: #{tpu_custom_call.1} parent=1 // pred_fallthru
      _
    // Predicated region
    $region34: #{tpu_custom_call.1} parent=1 // pred_check
      _
    $region35: #{tpu_custom_call.1} parent=1 // pred_check_branch
      %63 = sbr.rel (0) target = $region37
    $region36: #{tpu_custom_call.1} parent=1 // pred_region
      _
    $region37: #{tpu_custom_call.1} parent=1 // pred_fallthru
      _
    // Predicated region
    $region38: #{tpu_custom_call.1} parent=1 // pred_check
      _
    $region39: #{tpu_custom_call.1} parent=1 // pred_check_branch
      %65 = sbr.rel (0) target = $region41
    $region40: #{tpu_custom_call.1} parent=1 // pred_region
      %66 = dma.done [#allocation3], 2048
    $region41: #{tpu_custom_call.1} parent=1 // pred_fallthru
      _
    // Predicated region
    $region42: #{tpu_custom_call.1} parent=1 // pred_check
      _
    $region43: #{tpu_custom_call.1} parent=1 // pred_check_branch
      %68 = sbr.rel (0) target = $region45
    $region44: #{tpu_custom_call.1} parent=1 // pred_region
      %69 = dma.done [#allocation5], 2048
    $region45: #{tpu_custom_call.1} parent=1 // pred_fallthru
      _
    // Predicated region
    $region46: #{tpu_custom_call.1} parent=1 // pred_check
      _
    $region47: #{tpu_custom_call.1} parent=1 // pred_check_branch
      %71 = sbr.rel (0) target = $region49
    $region48: #{tpu_custom_call.1} parent=1 // pred_region
      %72 = dma.done [#allocation5], 2048
    $region49: #{tpu_custom_call.1} parent=1 // pred_fallthru
      _
    %v73 = vld [vmem:[%s0] sm:$0xff]
    %v74 = vld [vmem:[%s1] sm:$0x1]
    %76 = vset.pattern.permute.xlu0 0
    %77 = vperm.xlu0 %76, %v73
    %v78 = vpop.permute.xlu0 %77
    %v80 = vlaneseq
    %v81 = vshrl.u32 %v80, 7
    %v82 = vsub.s32 0, %v81
    %v83 = vrot.slane %v74, %v82
    %v84 = vmul.f32 %v78, %v83
    %v85 = vld [vmem:[%s1 + $0x1] sm:$0x1]
    %86 = vset.pattern.permute.xlu0 1
    %87 = vperm.xlu0 %86, %v73
    %v88 = vpop.permute.xlu0 %87
    %v90 = vlaneseq
    %v91 = vshrl.u32 %v90, 7
    %v92 = vsub.s32 0, %v91
    %v93 = vrot.slane %v85, %v92
    %v94 = vmul.f32 %v88, %v93
    %v95 = vadd.f32 %v84, %v94
    %v96 = vld [vmem:[%s2] sm:$0x1]
    %v98 = vlaneseq
    %v99 = vshrl.u32 %v98, 7
    %v100 = vsub.s32 0, %v99
    %v101 = vrot.slane %v96, %v100
    %v103 = vadd.f32 %v95, %v101
    %v104 = vmax.f32 %v103, 0.0
    %v105 = vld [vmem:[#allocation2] sm:$0xff]
    %v106 = vld [vmem:[#allocation2 + $0x8] sm:$0xff]
    %v107 = vld [vmem:[#allocation2 + $0x10] sm:$0xff]
    %v108 = vld [vmem:[#allocation2 + $0x18] sm:$0xff]
    %v109 = vld [vmem:[#allocation2 + $0x20] sm:$0xff]
    %v110 = vld [vmem:[#allocation2 + $0x28] sm:$0xff]
    %v111 = vld [vmem:[#allocation2 + $0x30] sm:$0xff]
    %v112 = vld [vmem:[#allocation2 + $0x38] sm:$0xff]
    %v113 = vld [vmem:[#allocation2 + $0x40] sm:$0xff]
    %v114 = vld [vmem:[#allocation2 + $0x48] sm:$0xff]
    %v115 = vld [vmem:[#allocation2 + $0x50] sm:$0xff]
    %v116 = vld [vmem:[#allocation2 + $0x58] sm:$0xff]
    %v117 = vld [vmem:[#allocation2 + $0x60] sm:$0xff]
    %v118 = vld [vmem:[#allocation2 + $0x68] sm:$0xff]
    %v119 = vld [vmem:[#allocation2 + $0x70] sm:$0xff]
    %v120 = vld [vmem:[#allocation2 + $0x78] sm:$0xff]
    %v121 = vld [vmem:[%s4] sm:$0x1]
    %v123 = vlaneseq
    %v124 = vshrl.u32 %v123, 7
    %v125 = vsub.s32 0, %v124
    %v126 = vrot.slane %v121, %v125
    %128 = vmatprep.subr.mxu0 0.0
    %129 = vmatpush1.msra.mxu0 %v120
    %130 = vmatprep.subr.mxu0 0.0
    %131 = vmatpush1.msra.mxu0 %v119
    %132 = vmatprep.subr.mxu0 0.0
    %133 = vmatpush1.msra.mxu0 %v118
    %134 = vmatprep.subr.mxu0 0.0
    %135 = vmatpush1.msra.mxu0 %v117
    %136 = vmatprep.subr.mxu0 0.0
    %137 = vmatpush1.msra.mxu0 %v116
    %138 = vmatprep.subr.mxu0 0.0
    %139 = vmatpush1.msra.mxu0 %v115
    %140 = vmatprep.subr.mxu0 0.0
    %141 = vmatpush1.msra.mxu0 %v114
    %142 = vmatprep.subr.mxu0 0.0
    %143 = vmatpush1.msra.mxu0 %v113
    %144 = vmatprep.subr.mxu0 0.0
    %145 = vmatpush1.msra.mxu0 %v112
    %146 = vmatprep.subr.mxu0 0.0
    %147 = vmatpush1.msra.mxu0 %v111
    %148 = vmatprep.subr.mxu0 0.0
    %149 = vmatpush1.msra.mxu0 %v110
    %150 = vmatprep.subr.mxu0 0.0
    %151 = vmatpush1.msra.mxu0 %v109
    %152 = vmatprep.subr.mxu0 0.0
    %153 = vmatpush1.msra.mxu0 %v108
    %154 = vmatprep.subr.mxu0 0.0
    %155 = vmatpush1.msra.mxu0 %v107
    %156 = vmatprep.subr.mxu0 0.0
    %157 = vmatpush1.msra.mxu0 %v106
    %158 = vmatprep.subr.mxu0 0.0
    %159 = vmatpush1.msra.mxu0 %v105
    %160 = vmatprep.subr.mxu0 0.0
    %161 = vmatpush2.msra.mxu0 0.0
    %162 = vmatprep.subr.mxu0 0.0
    %163 = vmatpush2.msra.mxu0 0.0
    %164 = vmatprep.subr.mxu0 0.0
    %165 = vmatpush2.msra.mxu0 0.0
    %166 = vmatprep.subr.mxu0 0.0
    %167 = vmatpush2.msra.mxu0 0.0
    %168 = vmatprep.subr.mxu0 0.0
    %169 = vmatpush2.msra.mxu0 0.0
    %170 = vmatprep.subr.mxu0 0.0
    %171 = vmatpush2.msra.mxu0 0.0
    %172 = vmatprep.subr.mxu0 0.0
    %173 = vmatpush2.msra.mxu0 0.0
    %174 = vmatprep.subr.mxu0 0.0
    %175 = vmatpush2.msra.mxu0 0.0
    %176 = vmatprep.subr.mxu0 0.0
    %177 = vmatpush2.msra.mxu0 0.0
    %178 = vmatprep.subr.mxu0 0.0
    %179 = vmatpush2.msra.mxu0 0.0
    %180 = vmatprep.subr.mxu0 0.0
    %181 = vmatpush2.msra.mxu0 0.0
    %182 = vmatprep.subr.mxu0 0.0
    %183 = vmatpush2.msra.mxu0 0.0
    %184 = vmatprep.subr.mxu0 0.0
    %185 = vmatpush2.msra.mxu0 0.0
    %186 = vmatprep.subr.mxu0 0.0
    %187 = vmatpush2.msra.mxu0 0.0
    %188 = vmatprep.subr.mxu0 0.0
    %189 = vmatpush2.msra.mxu0 0.0
    %190 = vmatprep.subr.mxu0 0.0
    %191 = vmatpush2.msra.mxu0 0.0
    %192 = vmatprep.mubr.f32.mxu0 0.0
    %193 = vmatmul.mubr.f32.gmra.mxu0 %v104
    %v194 = vpop.f32.mrf.mxu0
    %v195 = vadd.f32 %v126, %v194
    %v196 = vpop.f32.mrf.mxu0
    %197 = vdwg.mxu0
    %v198 = vmax.f32 %v195, 0.0
    %v199 = vld [vmem:[#allocation4] sm:$0xff]
    %v200 = vld [vmem:[#allocation4 + $0x8] sm:$0xff]
    %v201 = vld [vmem:[#allocation4 + $0x10] sm:$0xff]
    %v202 = vld [vmem:[#allocation4 + $0x18] sm:$0xff]
    %v203 = vld [vmem:[#allocation4 + $0x20] sm:$0xff]
    %v204 = vld [vmem:[#allocation4 + $0x28] sm:$0xff]
    %v205 = vld [vmem:[#allocation4 + $0x30] sm:$0xff]
    %v206 = vld [vmem:[#allocation4 + $0x38] sm:$0xff]
    %v207 = vld [vmem:[#allocation4 + $0x40] sm:$0xff]
    %v208 = vld [vmem:[#allocation4 + $0x48] sm:$0xff]
    %v209 = vld [vmem:[#allocation4 + $0x50] sm:$0xff]
    %v210 = vld [vmem:[#allocation4 + $0x58] sm:$0xff]
    %v211 = vld [vmem:[#allocation4 + $0x60] sm:$0xff]
    %v212 = vld [vmem:[#allocation4 + $0x68] sm:$0xff]
    %v213 = vld [vmem:[#allocation4 + $0x70] sm:$0xff]
    %v214 = vld [vmem:[#allocation4 + $0x78] sm:$0xff]
    %v215 = vld [vmem:[%s6] sm:$0x1]
    %v217 = vlaneseq
    %v218 = vshrl.u32 %v217, 7
    %v219 = vsub.s32 0, %v218
    %v220 = vrot.slane %v215, %v219
    %222 = vmatprep.subr.mxu0 0.0
    %223 = vmatpush1.msra.mxu0 %v214
    %224 = vmatprep.subr.mxu0 0.0
    %225 = vmatpush1.msra.mxu0 %v213
    %226 = vmatprep.subr.mxu0 0.0
    %227 = vmatpush1.msra.mxu0 %v212
    %228 = vmatprep.subr.mxu0 0.0
    %229 = vmatpush1.msra.mxu0 %v211
    %230 = vmatprep.subr.mxu0 0.0
    %231 = vmatpush1.msra.mxu0 %v210
    %232 = vmatprep.subr.mxu0 0.0
    %233 = vmatpush1.msra.mxu0 %v209
    %234 = vmatprep.subr.mxu0 0.0
    %235 = vmatpush1.msra.mxu0 %v208
    %236 = vmatprep.subr.mxu0 0.0
    %237 = vmatpush1.msra.mxu0 %v207
    %238 = vmatprep.subr.mxu0 0.0
    %239 = vmatpush1.msra.mxu0 %v206
    %240 = vmatprep.subr.mxu0 0.0
    %241 = vmatpush1.msra.mxu0 %v205
    %242 = vmatprep.subr.mxu0 0.0
    %243 = vmatpush1.msra.mxu0 %v204
    %244 = vmatprep.subr.mxu0 0.0
    %245 = vmatpush1.msra.mxu0 %v203
    %246 = vmatprep.subr.mxu0 0.0
    %247 = vmatpush1.msra.mxu0 %v202
    %248 = vmatprep.subr.mxu0 0.0
    %249 = vmatpush1.msra.mxu0 %v201
    %250 = vmatprep.subr.mxu0 0.0
    %251 = vmatpush1.msra.mxu0 %v200
    %252 = vmatprep.subr.mxu0 0.0
    %253 = vmatpush1.msra.mxu0 %v199
    %254 = vmatprep.subr.mxu0 0.0
    %255 = vmatpush2.msra.mxu0 0.0
    %256 = vmatprep.subr.mxu0 0.0
    %257 = vmatpush2.msra.mxu0 0.0
    %258 = vmatprep.subr.mxu0 0.0
    %259 = vmatpush2.msra.mxu0 0.0
    %260 = vmatprep.subr.mxu0 0.0
    %261 = vmatpush2.msra.mxu0 0.0
    %262 = vmatprep.subr.mxu0 0.0
    %263 = vmatpush2.msra.mxu0 0.0
    %264 = vmatprep.subr.mxu0 0.0
    %265 = vmatpush2.msra.mxu0 0.0
    %266 = vmatprep.subr.mxu0 0.0
    %267 = vmatpush2.msra.mxu0 0.0
    %268 = vmatprep.subr.mxu0 0.0
    %269 = vmatpush2.msra.mxu0 0.0
    %270 = vmatprep.subr.mxu0 0.0
    %271 = vmatpush2.msra.mxu0 0.0
    %272 = vmatprep.subr.mxu0 0.0
    %273 = vmatpush2.msra.mxu0 0.0
    %274 = vmatprep.subr.mxu0 0.0
    %275 = vmatpush2.msra.mxu0 0.0
    %276 = vmatprep.subr.mxu0 0.0
    %277 = vmatpush2.msra.mxu0 0.0
    %278 = vmatprep.subr.mxu0 0.0
    %279 = vmatpush2.msra.mxu0 0.0
    %280 = vmatprep.subr.mxu0 0.0
    %281 = vmatpush2.msra.mxu0 0.0
    %282 = vmatprep.subr.mxu0 0.0
    %283 = vmatpush2.msra.mxu0 0.0
    %284 = vmatprep.subr.mxu0 0.0
    %285 = vmatpush2.msra.mxu0 0.0
    %286 = vmatprep.mubr.f32.mxu0 0.0
    %287 = vmatmul.mubr.f32.gmra.mxu0 %v198
    %v288 = vpop.f32.mrf.mxu0
    %v289 = vadd.f32 %v220, %v288
    %v290 = vpop.f32.mrf.mxu0
    %291 = vdwg.mxu0
    %v292 = vmul.f32 %v289, %v289
    %293 = vadd.xlane.f32.xlu0 %v292
    %v294 = vpop.xlane.xlu0 %293
    %v295 = vrsqrt.pop %v294
    %v296 = vmul.f32 %v294, %v295
    %vm297 = vcmp.eq.f32.partialorder %v294, inf
    %v298 = vsel %vm297, %v294, %v296
    %vm299 = vcmp.eq.f32.partialorder %v294, 0.0
    %v300 = vand.u32 %v294, 2147483648
    %v301 = vsel %vm299, %v300, %v298
    %v302 = vmax.f32 %v301, 1e-12
    %v303 = vrcp.pop %v302
    %v304 = vmul.f32 %v289, %v303
    %v305 = vld [vmem:[#allocation6] sm:$0xff]
    %v306 = vld [vmem:[#allocation6 + $0x8] sm:$0xff]
    %v307 = vld [vmem:[#allocation6 + $0x10] sm:$0xff]
    %v308 = vld [vmem:[#allocation6 + $0x18] sm:$0xff]
    %v309 = vld [vmem:[#allocation6 + $0x20] sm:$0xff]
    %v310 = vld [vmem:[#allocation6 + $0x28] sm:$0xff]
    %v311 = vld [vmem:[#allocation6 + $0x30] sm:$0xff]
    %v312 = vld [vmem:[#allocation6 + $0x38] sm:$0xff]
    %v313 = vld [vmem:[#allocation6 + $0x40] sm:$0xff]
    %v314 = vld [vmem:[#allocation6 + $0x48] sm:$0xff]
    %v315 = vld [vmem:[#allocation6 + $0x50] sm:$0xff]
    %v316 = vld [vmem:[#allocation6 + $0x58] sm:$0xff]
    %v317 = vld [vmem:[#allocation6 + $0x60] sm:$0xff]
    %v318 = vld [vmem:[#allocation6 + $0x68] sm:$0xff]
    %v319 = vld [vmem:[#allocation6 + $0x70] sm:$0xff]
    %v320 = vld [vmem:[#allocation6 + $0x78] sm:$0xff]
    %v321 = vld [vmem:[%s8] sm:$0x1]
    %v323 = vlaneseq
    %v324 = vshrl.u32 %v323, 7
    %v325 = vsub.s32 0, %v324
    %v326 = vrot.slane %v321, %v325
    %328 = vmatprep.subr.mxu0 0.0
    %329 = vmatpush1.msra.mxu0 %v320
    %330 = vmatprep.subr.mxu0 0.0
    %331 = vmatpush1.msra.mxu0 %v319
    %332 = vmatprep.subr.mxu0 0.0
    %333 = vmatpush1.msra.mxu0 %v318
    %334 = vmatprep.subr.mxu0 0.0
    %335 = vmatpush1.msra.mxu0 %v317
    %336 = vmatprep.subr.mxu0 0.0
    %337 = vmatpush1.msra.mxu0 %v316
    %338 = vmatprep.subr.mxu0 0.0
    %339 = vmatpush1.msra.mxu0 %v315
    %340 = vmatprep.subr.mxu0 0.0
    %341 = vmatpush1.msra.mxu0 %v314
    %342 = vmatprep.subr.mxu0 0.0
    %343 = vmatpush1.msra.mxu0 %v313
    %344 = vmatprep.subr.mxu0 0.0
    %345 = vmatpush1.msra.mxu0 %v312
    %346 = vmatprep.subr.mxu0 0.0
    %347 = vmatpush1.msra.mxu0 %v311
    %348 = vmatprep.subr.mxu0 0.0
    %349 = vmatpush1.msra.mxu0 %v310
    %350 = vmatprep.subr.mxu0 0.0
    %351 = vmatpush1.msra.mxu0 %v309
    %352 = vmatprep.subr.mxu0 0.0
    %353 = vmatpush1.msra.mxu0 %v308
    %354 = vmatprep.subr.mxu0 0.0
    %355 = vmatpush1.msra.mxu0 %v307
    %356 = vmatprep.subr.mxu0 0.0
    %357 = vmatpush1.msra.mxu0 %v306
    %358 = vmatprep.subr.mxu0 0.0
    %359 = vmatpush1.msra.mxu0 %v305
    %360 = vmatprep.subr.mxu0 0.0
    %361 = vmatpush2.msra.mxu0 0.0
    %362 = vmatprep.subr.mxu0 0.0
    %363 = vmatpush2.msra.mxu0 0.0
    %364 = vmatprep.subr.mxu0 0.0
    %365 = vmatpush2.msra.mxu0 0.0
    %366 = vmatprep.subr.mxu0 0.0
    %367 = vmatpush2.msra.mxu0 0.0
    %368 = vmatprep.subr.mxu0 0.0
    %369 = vmatpush2.msra.mxu0 0.0
    %370 = vmatprep.subr.mxu0 0.0
    %371 = vmatpush2.msra.mxu0 0.0
    %372 = vmatprep.subr.mxu0 0.0
    %373 = vmatpush2.msra.mxu0 0.0
    %374 = vmatprep.subr.mxu0 0.0
    %375 = vmatpush2.msra.mxu0 0.0
    %376 = vmatprep.subr.mxu0 0.0
    %377 = vmatpush2.msra.mxu0 0.0
    %378 = vmatprep.subr.mxu0 0.0
    %379 = vmatpush2.msra.mxu0 0.0
    %380 = vmatprep.subr.mxu0 0.0
    %381 = vmatpush2.msra.mxu0 0.0
    %382 = vmatprep.subr.mxu0 0.0
    %383 = vmatpush2.msra.mxu0 0.0
    %384 = vmatprep.subr.mxu0 0.0
    %385 = vmatpush2.msra.mxu0 0.0
    %386 = vmatprep.subr.mxu0 0.0
    %387 = vmatpush2.msra.mxu0 0.0
    %388 = vmatprep.subr.mxu0 0.0
    %389 = vmatpush2.msra.mxu0 0.0
    %390 = vmatprep.subr.mxu0 0.0
    %391 = vmatpush2.msra.mxu0 0.0
    %392 = vmatprep.mubr.f32.mxu0 0.0
    %393 = vmatmul.mubr.f32.gmra.mxu0 %v304
    %v394 = vpop.f32.mrf.mxu0
    %v395 = vadd.f32 %v326, %v394
    %v396 = vpop.f32.mrf.mxu0
    %397 = vdwg.mxu0
    %vm398 = vcmask 15360
    %399 = vst.msk [vmem:[%s9] sm:$0xff] %vm398, %v395
    // Predicated region
    $region50: #{tpu_custom_call.1} parent=1 // pred_check
      _
    $region51: #{tpu_custom_call.1} parent=1 // pred_check_branch
      %401 = sbr.rel (0) target = $region53
    $region52: #{tpu_custom_call.1} parent=1 // pred_region
      _
    $region53: #{tpu_custom_call.1} parent=1 // pred_fallthru
      _
    // Predicated region
    $region54: #{tpu_custom_call.1} parent=1 // pred_check
      _
    $region55: #{tpu_custom_call.1} parent=1 // pred_check_branch
      %403 = sbr.rel (0) target = $region57
    $region56: #{tpu_custom_call.1} parent=1 // pred_region
      _
    $region57: #{tpu_custom_call.1} parent=1 // pred_fallthru
      _
    %404 = vsyncpa [#allocation3], 1
    %405 = vsyncpa [#allocation5], 1

</llo_original>
